<compile_context>
chip_gen: v6e
topology: v6e:2x2x1
jax: 0.10.0
libtpu: 0.0.40
codegen_flags: <defaults>
</compile_context>

<pallas_src>
import functools
import math

import jax
import jax.numpy as jnp
from jax.experimental import pallas as pl
from jax.experimental.pallas import tpu as pltpu


def _relation_kernel(ft_ref, nb_ref, wft_ref, wnb_ref, r_ref, out_ref, *,
                     mxu_dtype):
    ft = ft_ref[...]
    nb = nb_ref[...]
    F = ft.shape[-1]

    # Fused pre-activations: z[:, :F] = gamma_pre, z[:, F:] = beta_pre.
    # The cast to mxu_dtype happens on VMEM-resident tiles (no extra HBM
    # traffic); accumulation is always f32.
    z = jnp.dot(ft.astype(mxu_dtype), wft_ref[...],
                preferred_element_type=jnp.float32)
    z = z + jnp.dot(nb.astype(mxu_dtype), wnb_ref[...],
                    preferred_element_type=jnp.float32)

    # leaky_relu(0.2): one mul + max (slope < 1).
    z = jnp.maximum(z, 0.2 * z)
    gamma = z[:, :F] + 1.0
    beta = z[:, F:]

    r_v = gamma * r_ref[...] + beta              # (1, F) broadcasts to (tm, F)
    # Fused epilogue (pure VPU work hidden under the streaming DMAs).
    out_ref[...] = (ft.astype(jnp.float32) + r_v
                    - nb.astype(jnp.float32)).astype(out_ref.dtype)


def relation_forward(ft, neighbor, wg1, wg2, wb1, wb2, r, *, tm=None,
                     mxu_bf16=False, out_dtype=jnp.float32):
    """ft, neighbor: [N, F] (f32 or bf16 — streamed as given, no wrapper cast).
    w*: PyTorch-layout [F_out, F_in].  r: [1, F].

    mxu_bf16:  cast tiles to bf16 inside the kernel for the matmuls only
               (f32 streaming + f32 accumulation kept).  Useful on v5e where
               the f32 path is MXU-bound.
    out_dtype: output HBM dtype (f32 default; bf16 cuts output stream in half).
    """
    N, F = ft.shape
    assert neighbor.shape == (N, F)

    in_dtype = jnp.dtype(ft.dtype)
    in_bytes = in_dtype.itemsize
    # bf16 inputs already stream narrow; f32 inputs use bf16 MXU only if asked.
    mxu_dtype = jnp.bfloat16 if (in_bytes < 4 or mxu_bf16) else jnp.float32

    # Fuse the four weights into two [F, 2F] slabs (pre-transposed so the
    # kernel does plain x @ W):  z = ft @ [Wg1^T | Wb1^T] + nb @ [Wg2^T | Wb2^T]
    w_ft = jnp.concatenate([wg1.T, wb1.T], axis=1).astype(mxu_dtype)
    w_nb = jnp.concatenate([wg2.T, wb2.T], axis=1).astype(mxu_dtype)
    r = r.astype(jnp.float32)

    # Row tile: multi-MiB steps amortize per-step pipeline overhead; align to
    # the dtype's native sublane multiple; cap by a VMEM budget that is safe
    # on every chip (v5e 16 MiB scoped default, v7x 32 MiB of 64 MiB).
    sub = {4: 8, 2: 16, 1: 32}.get(in_bytes, 8)
    if tm is None:
        tm = 2048 if in_bytes >= 4 else 4096
    out_bytes = jnp.dtype(out_dtype).itemsize
    vmem_budget = 12 * 1024 * 1024            # for the double-buffered tiles
    per_row = 2 * (2 * in_bytes + out_bytes) * F   # 2x buffers, ft+nb in, out
    tm_cap = max(sub, (vmem_budget // per_row) // sub * sub)
    tm_eff = max(sub, (min(int(tm), tm_cap) // sub) * sub)
    # Never use a block taller than the (sublane-rounded-up) row count.
    tm_eff = min(tm_eff, pl.cdiv(N, sub) * sub)

    n_blocks = pl.cdiv(N, tm_eff)             # partial last block masked by Pallas

    row_spec = pl.BlockSpec((tm_eff, F), lambda i: (i, 0))
    w_spec = pl.BlockSpec((F, 2 * F), lambda i: (0, 0))   # grid-invariant
    r_spec = pl.BlockSpec((1, F), lambda i: (0, 0))       # grid-invariant

    kernel = functools.partial(_relation_kernel, mxu_dtype=mxu_dtype)

    return pl.pallas_call(
        kernel,
        out_shape=jax.ShapeDtypeStruct((N, F), out_dtype),
        grid_spec=pltpu.PrefetchScalarGridSpec(
            num_scalar_prefetch=0,
            grid=(n_blocks,),
            in_specs=[row_spec, row_spec, w_spec, w_spec, r_spec],
            out_specs=row_spec,
        ),
        compiler_params=pltpu.CompilerParams(
            dimension_semantics=("parallel",)),
    )(ft, neighbor, w_ft, w_nb, r)


def _reference(ft, nb, wg1, wg2, wb1, wb2, r):
    def lrelu(x):
        return jnp.where(x > 0, x, 0.2 * x)
    ft = ft.astype(jnp.float32)
    nb = nb.astype(jnp.float32)
    gamma = lrelu(ft @ wg1.T + nb @ wg2.T) + 1.0
    beta = lrelu(ft @ wb1.T + nb @ wb2.T)
    r_v = gamma * r + beta
    return ft + r_v - nb


if __name__ == "__main__":
    F = 128
    key = jax.random.PRNGKey(0)
    k = jax.random.split(key, 7)

    # Deterministic synthetic parameters (shapes from Relation.__init__).
    bound_w = 1.0 / math.sqrt(F)                       # ~PyTorch Linear init
    wg1 = jax.random.uniform(k[0], (F, F), jnp.float32, -bound_w, bound_w)
    wg2 = jax.random.uniform(k[1], (F, F), jnp.float32, -bound_w, bound_w)
    wb1 = jax.random.uniform(k[2], (F, F), jnp.float32, -bound_w, bound_w)
    wb2 = jax.random.uniform(k[3], (F, F), jnp.float32, -bound_w, bound_w)
    stdv = 1.0 / math.sqrt(F)                          # reset_parameter()
    r = jax.random.uniform(k[4], (1, F), jnp.float32, -stdv, stdv)

    # Case 1: small aligned N, exact f32 path.
    N = 16
    ft = jax.random.normal(k[5], (N, F), jnp.float32)
    neighbor = jax.random.normal(k[6], (N, F), jnp.float32)
    out = jax.block_until_ready(
        relation_forward(ft, neighbor, wg1, wg2, wb1, wb2, r))
    ref = _reference(ft, neighbor, wg1, wg2, wb1, wb2, r)
    assert out.shape == (N, F) and out.dtype == jnp.float32
    assert jnp.allclose(out, ref, atol=1e-4, rtol=1e-4)

    # Case 2: ragged N (no pad/slice; Pallas masks the partial block).
    N2 = 20
    ft2 = jax.random.normal(jax.random.fold_in(key, 1), (N2, F), jnp.float32)
    nb2 = jax.random.normal(jax.random.fold_in(key, 2), (N2, F), jnp.float32)
    out2 = jax.block_until_ready(
        relation_forward(ft2, nb2, wg1, wg2, wb1, wb2, r))
    ref2 = _reference(ft2, nb2, wg1, wg2, wb1, wb2, r)
    assert out2.shape == (N2, F)
    assert jnp.allclose(out2, ref2, atol=1e-4, rtol=1e-4)

    # Case 3: bf16 *inputs* (the real bandwidth path), loose tolerance.
    out3 = jax.block_until_ready(
        relation_forward(ft.astype(jnp.bfloat16), neighbor.astype(jnp.bfloat16),
                         wg1, wg2, wb1, wb2, r))
    assert out3.shape == (N, F) and bool(jnp.all(jnp.isfinite(out3)))
    assert jnp.allclose(out3, ref, atol=5e-2, rtol=5e-2)

    # Case 4: f32 streaming with in-kernel bf16 MXU cast (v5e MXU-bound fix).
    out4 = jax.block_until_ready(
        relation_forward(ft, neighbor, wg1, wg2, wb1, wb2, r, mxu_bf16=True))
    assert out4.shape == (N, F)
    assert jnp.allclose(out4, ref, atol=5e-2, rtol=5e-2)

    # Case 5: bf16 output epilogue cast.
    out5 = jax.block_until_ready(
        relation_forward(ft, neighbor, wg1, wg2, wb1, wb2, r,
                         out_dtype=jnp.bfloat16))
    assert out5.dtype == jnp.bfloat16
    assert jnp.allclose(out5.astype(jnp.float32), ref, atol=5e-2, rtol=5e-2)

    print("KERNEL_OK")
</pallas_src>

<mosaic_0001>
module attributes {stable_mosaic.version = 11 : i64} {
  func.func @_relation_kernel(%arg0: i32, %arg1: memref<16x128xf32, #tpu.memory_space<vmem>>, %arg2: memref<16x128xf32, #tpu.memory_space<vmem>>, %arg3: memref<128x256xf32, #tpu.memory_space<vmem>>, %arg4: memref<128x256xf32, #tpu.memory_space<vmem>>, %arg5: memref<1x128xf32, #tpu.memory_space<vmem>>, %arg6: memref<16x128xf32, #tpu.memory_space<vmem>>) attributes {dimension_semantics = [#tpu.dimension_semantics<parallel>], iteration_bounds = array<i64: 1>, scalar_prefetch = 0 : i64, scratch_operands = 0 : i64, tpu.core_type = #tpu.core_type<tc>, window_params = [{transform_indices = @transform_0, window_bounds = array<i64: 16, 128>}, {transform_indices = @transform_1, window_bounds = array<i64: 16, 128>}, {pipeline_mode = #tpu.pipeline_mode<synchronous>, transform_indices = @transform_2, window_bounds = array<i64: 128, 256>}, {pipeline_mode = #tpu.pipeline_mode<synchronous>, transform_indices = @transform_3, window_bounds = array<i64: 128, 256>}, {pipeline_mode = #tpu.pipeline_mode<synchronous>, transform_indices = @transform_4, window_bounds = array<i64: 1, 128>}, {transform_indices = @transform_5, window_bounds = array<i64: 16, 128>}]} {
    %c0 = arith.constant 0 : index
    %c0_0 = arith.constant 0 : index
    %0 = vector.load %arg1[%c0, %c0_0] : memref<16x128xf32, #tpu.memory_space<vmem>>, vector<16x128xf32>
    %c0_1 = arith.constant 0 : index
    %c0_2 = arith.constant 0 : index
    %1 = vector.load %arg2[%c0_1, %c0_2] : memref<16x128xf32, #tpu.memory_space<vmem>>, vector<16x128xf32>
    %c0_3 = arith.constant 0 : index
    %c0_4 = arith.constant 0 : index
    %2 = vector.load %arg3[%c0_3, %c0_4] : memref<128x256xf32, #tpu.memory_space<vmem>>, vector<128x256xf32>
    %cst = arith.constant dense<0.000000e+00> : vector<16x256xf32>
    %3 = tpu.matmul %0, %2, %cst {dimension_numbers = #tpu.dot_dimension_numbers<[1], [0], [0], [1], [0, 0, 1, 1], [], []>} : vector<16x128xf32>, vector<128x256xf32>, vector<16x256xf32> -> vector<16x256xf32>
    %c0_5 = arith.constant 0 : index
    %c0_6 = arith.constant 0 : index
    %4 = vector.load %arg4[%c0_5, %c0_6] : memref<128x256xf32, #tpu.memory_space<vmem>>, vector<128x256xf32>
    %cst_7 = arith.constant dense<0.000000e+00> : vector<16x256xf32>
    %5 = tpu.matmul %1, %4, %cst_7 {dimension_numbers = #tpu.dot_dimension_numbers<[1], [0], [0], [1], [0, 0, 1, 1], [], []>} : vector<16x128xf32>, vector<128x256xf32>, vector<16x256xf32> -> vector<16x256xf32>
    %6 = arith.addf %3, %5 : vector<16x256xf32>
    %cst_8 = arith.constant 2.000000e-01 : f32
    %7 = vector.broadcast %cst_8 : f32 to vector<16x256xf32>
    %8 = arith.mulf %7, %6 : vector<16x256xf32>
    %9 = arith.maximumf %6, %8 : vector<16x256xf32>
    %10 = vector.extract_strided_slice %9 {offsets = [0, 0], sizes = [16, 128], strides = [1, 1]} : vector<16x256xf32> to vector<16x128xf32>
    %cst_9 = arith.constant 1.000000e+00 : f32
    %11 = vector.broadcast %cst_9 : f32 to vector<16x128xf32>
    %12 = arith.addf %10, %11 : vector<16x128xf32>
    %13 = vector.extract_strided_slice %9 {offsets = [0, 128], sizes = [16, 128], strides = [1, 1]} : vector<16x256xf32> to vector<16x128xf32>
    %c0_10 = arith.constant 0 : index
    %c0_11 = arith.constant 0 : index
    %14 = vector.load %arg5[%c0_10, %c0_11] : memref<1x128xf32, #tpu.memory_space<vmem>>, vector<1x128xf32>
    %15 = vector.broadcast %14 : vector<1x128xf32> to vector<16x128xf32>
    %16 = arith.mulf %12, %15 : vector<16x128xf32>
    %17 = arith.addf %16, %13 : vector<16x128xf32>
    %18 = arith.addf %0, %17 : vector<16x128xf32>
    %19 = arith.subf %18, %1 : vector<16x128xf32>
    %c0_12 = arith.constant 0 : index
    %c0_13 = arith.constant 0 : index
    %20 = vector.load %arg6[%c0_12, %c0_13] : memref<16x128xf32, #tpu.memory_space<vmem>>, vector<16x128xf32>
    tpu.vector_store %arg6[%c0_12, %c0_13], %19 {strides = array<i32>} : memref<16x128xf32, #tpu.memory_space<vmem>>, vector<16x128xf32>,
    return
  }
  func.func @transform_0(%arg0: i32) -> (i32, i32) {
    %c0_i32 = arith.constant 0 : i32
    %c0_i32_0 = arith.constant 0 : i32
    return %arg0, %c0_i32 : i32, i32
  }
  func.func @transform_1(%arg0: i32) -> (i32, i32) {
    %c0_i32 = arith.constant 0 : i32
    %c0_i32_0 = arith.constant 0 : i32
    return %arg0, %c0_i32 : i32, i32
  }
  func.func @transform_2(%arg0: i32) -> (i32, i32) {
    %c0_i32 = arith.constant 0 : i32
    %c0_i32_0 = arith.constant 0 : i32
    %c0_i32_1 = arith.constant 0 : i32
    return %c0_i32, %c0_i32_0 : i32, i32
  }
  func.func @transform_3(%arg0: i32) -> (i32, i32) {
    %c0_i32 = arith.constant 0 : i32
    %c0_i32_0 = arith.constant 0 : i32
    %c0_i32_1 = arith.constant 0 : i32
    return %c0_i32, %c0_i32_0 : i32, i32
  }
  func.func @transform_4(%arg0: i32) -> (i32, i32) {
    %c0_i32 = arith.constant 0 : i32
    %c0_i32_0 = arith.constant 0 : i32
    %c0_i32_1 = arith.constant 0 : i32
    return %c0_i32, %c0_i32_0 : i32, i32
  }
  func.func @transform_5(%arg0: i32) -> (i32, i32) {
    %c0_i32 = arith.constant 0 : i32
    %c0_i32_0 = arith.constant 0 : i32
    return %arg0, %c0_i32 : i32, i32
  }
}

</mosaic_0001>

<llo_original>
// kernel: tpu_custom_call.1
$region0: #{tpu_custom_call.1}
  #allocation0 [shape = 'u32[]', space=smem, size = 0x4, offset = 0x4, fixed_abs, tag = 'smem constant byte address 0x4 - core index']
  #allocation1 [shape = 'u32[144,128]{1,0:T(1,128)}', space=vmem, size = 0x12000, scoped, tag = 'internal scratch']
  %s0 = inlined_call_operand.hbm [shape: f32[16,128], index: 0, kind: input, shape index: {}]
  %s1 = inlined_call_operand.hbm [shape: f32[16,128], index: 1, kind: input, shape index: {}]
  %s2 = inlined_call_operand.hbm [shape: f32[128,256], index: 2, kind: input, shape index: {}]
  %s3 = inlined_call_operand.hbm [shape: f32[128,256], index: 3, kind: input, shape index: {}]
  %s4 = inlined_call_operand.vmem [shape: f32[1,128], index: 4, kind: input, shape index: {}]
  %s5 = inlined_call_operand.hbm [shape: f32[16,128], index: 5, kind: output, shape index: {}]
  %s6 = sld [smem:[#allocation0]]
  $region46: #{tpu_custom_call.1} parent=0
    _
  %s8 = ssub.s32 1, %s6
  %s9 = scalar_select 0, %s8, %s6
  $region1: #{tpu_custom_call.1} parent=0
    #allocation2 [shape = 'u8[8192]{0}', space=vmem, size = 0x2000, scoped, tag = 'input window, operand 0, single buffered']
    #allocation3 [shape = 's32[1]{0}', space=sflag, size = 0x4, scoped, tag = 'scoped memory for tpu_custom_call.1']
    #allocation4 [shape = 's32[1]{0}', space=sflag, size = 0x4, scoped, tag = 'scoped memory for tpu_custom_call.1']
    #allocation5 [shape = 'u8[8192]{0}', space=vmem, size = 0x2000, scoped, tag = 'input window, operand 1, single buffered']
    #allocation6 [shape = 's32[1]{0}', space=sflag, size = 0x4, scoped, tag = 'scoped memory for tpu_custom_call.1']
    #allocation7 [shape = 'u8[131072]{0}', space=vmem, size = 0x20000, scoped, tag = 'input window, operand 2, single buffered']
    #allocation8 [shape = 'u8[131072]{0}', space=vmem, size = 0x20000, scoped, tag = 'input window, operand 3, single buffered']
    #allocation9 [shape = 's32[1]{0}', space=sflag, size = 0x4, scoped, tag = 'scoped memory for tpu_custom_call.1']
    #allocation10 [shape = 'u8[8192]{0}', space=vmem, size = 0x2000, scoped, tag = 'output window, operand 0, single buffered']
    %10 = vsyncpa [#allocation3], 0
    %11 = vsyncpa [#allocation6], 0
    %12 = vsyncpa [#allocation9], 0
    %13 = vsyncpa [#allocation4], 0
    // Predicated region
    $region2: #{tpu_custom_call.1} parent=1 // pred_check
      _
    $region3: #{tpu_custom_call.1} parent=1 // pred_check_branch
      %15 = sbr.rel (0) target = $region5
    $region4: #{tpu_custom_call.1} parent=1 // pred_region
      %s17 = ssub.s32 256, 256
      %18 = vsyncadd [#allocation3], %s17
      %s19 = sshll.u32 [#allocation2], 4
      %s20 = int_to_ptr.vmem [resolvable:$true] %s19
      %25 = dma.hbm_to_vmem [thread:$0]  %s0, 256, %s20, [#allocation3], 128, 128, 8
    $region5: #{tpu_custom_call.1} parent=1 // pred_fallthru
      _
    // Predicated region
    $region6: #{tpu_custom_call.1} parent=1 // pred_check
      _
    $region7: #{tpu_custom_call.1} parent=1 // pred_check_branch
      %27 = sbr.rel (0) target = $region9
    $region8: #{tpu_custom_call.1} parent=1 // pred_region
      %s29 = ssub.s32 256, 256
      %30 = vsyncadd [#allocation6], %s29
      %s31 = sshll.u32 [#allocation5], 4
      %s32 = int_to_ptr.vmem [resolvable:$true] %s31
      %37 = dma.hbm_to_vmem [thread:$0]  %s1, 256, %s32, [#allocation6], 128, 128, 8
    $region9: #{tpu_custom_call.1} parent=1 // pred_fallthru
      _
    // Predicated region
    $region10: #{tpu_custom_call.1} parent=1 // pred_check
      _
    $region11: #{tpu_custom_call.1} parent=1 // pred_check_branch
      %39 = sbr.rel (0) target = $region13
    $region12: #{tpu_custom_call.1} parent=1 // pred_region
      %s41 = ssub.s32 4096, 4096
      %42 = vsyncadd [#allocation6], %s41
      %s43 = sshll.u32 [#allocation7], 4
      %s44 = int_to_ptr.vmem [resolvable:$true] %s43
      %49 = dma.hbm_to_vmem [thread:$0]  %s2, 4096, %s44, [#allocation6], 256, 256, 16
    $region13: #{tpu_custom_call.1} parent=1 // pred_fallthru
      _
    // Predicated region
    $region14: #{tpu_custom_call.1} parent=1 // pred_check
      _
    $region15: #{tpu_custom_call.1} parent=1 // pred_check_branch
      %51 = sbr.rel (0) target = $region17
    $region16: #{tpu_custom_call.1} parent=1 // pred_region
      %s53 = ssub.s32 4096, 4096
      %54 = vsyncadd [#allocation9], %s53
      %s55 = sshll.u32 [#allocation8], 4
      %s56 = int_to_ptr.vmem [resolvable:$true] %s55
      %61 = dma.hbm_to_vmem [thread:$0]  %s3, 4096, %s56, [#allocation9], 256, 256, 16
    $region17: #{tpu_custom_call.1} parent=1 // pred_fallthru
      _
    // Predicated region
    $region18: #{tpu_custom_call.1} parent=1 // pred_check
      _
    $region19: #{tpu_custom_call.1} parent=1 // pred_check_branch
      %63 = sbr.rel (0) target = $region21
    $region20: #{tpu_custom_call.1} parent=1 // pred_region
      _
    $region21: #{tpu_custom_call.1} parent=1 // pred_fallthru
      _
    // Predicated region
    $region22: #{tpu_custom_call.1} parent=1 // pred_check
      _
    $region23: #{tpu_custom_call.1} parent=1 // pred_check_branch
      %65 = sbr.rel (0) target = $region25
    $region24: #{tpu_custom_call.1} parent=1 // pred_region
      %66 = dma.done [#allocation3], 256
    $region25: #{tpu_custom_call.1} parent=1 // pred_fallthru
      _
    // Predicated region
    $region26: #{tpu_custom_call.1} parent=1 // pred_check
      _
    $region27: #{tpu_custom_call.1} parent=1 // pred_check_branch
      %68 = sbr.rel (0) target = $region29
    $region28: #{tpu_custom_call.1} parent=1 // pred_region
      %69 = dma.done [#allocation6], 256
    $region29: #{tpu_custom_call.1} parent=1 // pred_fallthru
      _
    // Predicated region
    $region30: #{tpu_custom_call.1} parent=1 // pred_check
      _
    $region31: #{tpu_custom_call.1} parent=1 // pred_check_branch
      %71 = sbr.rel (0) target = $region33
    $region32: #{tpu_custom_call.1} parent=1 // pred_region
      %72 = dma.done [#allocation6], 4096
    $region33: #{tpu_custom_call.1} parent=1 // pred_fallthru
      _
    // Predicated region
    $region34: #{tpu_custom_call.1} parent=1 // pred_check
      _
    $region35: #{tpu_custom_call.1} parent=1 // pred_check_branch
      %74 = sbr.rel (0) target = $region37
    $region36: #{tpu_custom_call.1} parent=1 // pred_region
      %75 = dma.done [#allocation9], 4096
    $region37: #{tpu_custom_call.1} parent=1 // pred_fallthru
      _
    %v76 = vld [vmem:[#allocation2] sm:$0xff]
    %v77 = vld [vmem:[#allocation2 + $0x8] sm:$0xff]
    %v78 = vld [vmem:[#allocation5] sm:$0xff]
    %v79 = vld [vmem:[#allocation5 + $0x8] sm:$0xff]
    %v80 = vld [vmem:[#allocation7] sm:$0xff]
    %v81 = vld [vmem:[#allocation7 + $0x8] sm:$0xff]
    %v82 = vld [vmem:[#allocation7 + $0x10] sm:$0xff]
    %v83 = vld [vmem:[#allocation7 + $0x18] sm:$0xff]
    %v84 = vld [vmem:[#allocation7 + $0x20] sm:$0xff]
    %v85 = vld [vmem:[#allocation7 + $0x28] sm:$0xff]
    %v86 = vld [vmem:[#allocation7 + $0x30] sm:$0xff]
    %v87 = vld [vmem:[#allocation7 + $0x38] sm:$0xff]
    %v88 = vld [vmem:[#allocation7 + $0x40] sm:$0xff]
    %v89 = vld [vmem:[#allocation7 + $0x48] sm:$0xff]
    %v90 = vld [vmem:[#allocation7 + $0x50] sm:$0xff]
    %v91 = vld [vmem:[#allocation7 + $0x58] sm:$0xff]
    %v92 = vld [vmem:[#allocation7 + $0x60] sm:$0xff]
    %v93 = vld [vmem:[#allocation7 + $0x68] sm:$0xff]
    %v94 = vld [vmem:[#allocation7 + $0x70] sm:$0xff]
    %v95 = vld [vmem:[#allocation7 + $0x78] sm:$0xff]
    %v96 = vld [vmem:[#allocation7 + $0x80] sm:$0xff]
    %v97 = vld [vmem:[#allocation7 + $0x88] sm:$0xff]
    %v98 = vld [vmem:[#allocation7 + $0x90] sm:$0xff]
    %v99 = vld [vmem:[#allocation7 + $0x98] sm:$0xff]
    %v100 = vld [vmem:[#allocation7 + $0xa0] sm:$0xff]
    %v101 = vld [vmem:[#allocation7 + $0xa8] sm:$0xff]
    %v102 = vld [vmem:[#allocation7 + $0xb0] sm:$0xff]
    %v103 = vld [vmem:[#allocation7 + $0xb8] sm:$0xff]
    %v104 = vld [vmem:[#allocation7 + $0xc0] sm:$0xff]
    %v105 = vld [vmem:[#allocation7 + $0xc8] sm:$0xff]
    %v106 = vld [vmem:[#allocation7 + $0xd0] sm:$0xff]
    %v107 = vld [vmem:[#allocation7 + $0xd8] sm:$0xff]
    %v108 = vld [vmem:[#allocation7 + $0xe0] sm:$0xff]
    %v109 = vld [vmem:[#allocation7 + $0xe8] sm:$0xff]
    %v110 = vld [vmem:[#allocation7 + $0xf0] sm:$0xff]
    %v111 = vld [vmem:[#allocation7 + $0xf8] sm:$0xff]
    %v112 = vld [vmem:[#allocation8] sm:$0xff]
    %v113 = vld [vmem:[#allocation8 + $0x8] sm:$0xff]
    %v114 = vld [vmem:[#allocation8 + $0x10] sm:$0xff]
    %v115 = vld [vmem:[#allocation8 + $0x18] sm:$0xff]
    %v116 = vld [vmem:[#allocation8 + $0x20] sm:$0xff]
    %v117 = vld [vmem:[#allocation8 + $0x28] sm:$0xff]
    %v118 = vld [vmem:[#allocation8 + $0x30] sm:$0xff]
    %v119 = vld [vmem:[#allocation8 + $0x38] sm:$0xff]
    %v120 = vld [vmem:[#allocation8 + $0x40] sm:$0xff]
    %v121 = vld [vmem:[#allocation8 + $0x48] sm:$0xff]
    %v122 = vld [vmem:[#allocation8 + $0x50] sm:$0xff]
    %v123 = vld [vmem:[#allocation8 + $0x58] sm:$0xff]
    %v124 = vld [vmem:[#allocation8 + $0x60] sm:$0xff]
    %v125 = vld [vmem:[#allocation8 + $0x68] sm:$0xff]
    %v126 = vld [vmem:[#allocation8 + $0x70] sm:$0xff]
    %v127 = vld [vmem:[#allocation8 + $0x78] sm:$0xff]
    %v128 = vld [vmem:[#allocation8 + $0x80] sm:$0xff]
    %v129 = vld [vmem:[#allocation8 + $0x88] sm:$0xff]
    %v130 = vld [vmem:[#allocation8 + $0x90] sm:$0xff]
    %v131 = vld [vmem:[#allocation8 + $0x98] sm:$0xff]
    %v132 = vld [vmem:[#allocation8 + $0xa0] sm:$0xff]
    %v133 = vld [vmem:[#allocation8 + $0xa8] sm:$0xff]
    %v134 = vld [vmem:[#allocation8 + $0xb0] sm:$0xff]
    %v135 = vld [vmem:[#allocation8 + $0xb8] sm:$0xff]
    %v136 = vld [vmem:[#allocation8 + $0xc0] sm:$0xff]
    %v137 = vld [vmem:[#allocation8 + $0xc8] sm:$0xff]
    %v138 = vld [vmem:[#allocation8 + $0xd0] sm:$0xff]
    %v139 = vld [vmem:[#allocation8 + $0xd8] sm:$0xff]
    %v140 = vld [vmem:[#allocation8 + $0xe0] sm:$0xff]
    %v141 = vld [vmem:[#allocation8 + $0xe8] sm:$0xff]
    %v142 = vld [vmem:[#allocation8 + $0xf0] sm:$0xff]
    %v143 = vld [vmem:[#allocation8 + $0xf8] sm:$0xff]
    %144 = vmatprep.subr.mxu0 %v143
    %145 = vmatpush1.msra.mxu0 %v142
    %146 = vmatprep.subr.mxu0 %v141
    %147 = vmatpush1.msra.mxu0 %v140
    %148 = vmatprep.subr.mxu0 %v139
    %149 = vmatpush1.msra.mxu0 %v138
    %150 = vmatprep.subr.mxu0 %v137
    %151 = vmatpush1.msra.mxu0 %v136
    %152 = vmatprep.subr.mxu0 %v135
    %153 = vmatpush1.msra.mxu0 %v134
    %154 = vmatprep.subr.mxu0 %v133
    %155 = vmatpush1.msra.mxu0 %v132
    %156 = vmatprep.subr.mxu0 %v131
    %157 = vmatpush1.msra.mxu0 %v130
    %158 = vmatprep.subr.mxu0 %v129
    %159 = vmatpush1.msra.mxu0 %v128
    %160 = vmatprep.subr.mxu0 %v127
    %161 = vmatpush1.msra.mxu0 %v126
    %162 = vmatprep.subr.mxu0 %v125
    %163 = vmatpush1.msra.mxu0 %v124
    %164 = vmatprep.subr.mxu0 %v123
    %165 = vmatpush1.msra.mxu0 %v122
    %166 = vmatprep.subr.mxu0 %v121
    %167 = vmatpush1.msra.mxu0 %v120
    %168 = vmatprep.subr.mxu0 %v119
    %169 = vmatpush1.msra.mxu0 %v118
    %170 = vmatprep.subr.mxu0 %v117
    %171 = vmatpush1.msra.mxu0 %v116
    %172 = vmatprep.subr.mxu0 %v115
    %173 = vmatpush1.msra.mxu0 %v114
    %174 = vmatprep.subr.mxu0 %v113
    %175 = vmatpush1.msra.mxu0 %v112
    %176 = vmatprep.subr.mxu0 0.0
    %177 = vmatpush2.msra.mxu0 0.0
    %178 = vmatprep.subr.mxu0 0.0
    %179 = vmatpush2.msra.mxu0 0.0
    %180 = vmatprep.subr.mxu0 0.0
    %181 = vmatpush2.msra.mxu0 0.0
    %182 = vmatprep.subr.mxu0 0.0
    %183 = vmatpush2.msra.mxu0 0.0
    %184 = vmatprep.subr.mxu0 0.0
    %185 = vmatpush2.msra.mxu0 0.0
    %186 = vmatprep.subr.mxu0 0.0
    %187 = vmatpush2.msra.mxu0 0.0
    %188 = vmatprep.subr.mxu0 0.0
    %189 = vmatpush2.msra.mxu0 0.0
    %190 = vmatprep.subr.mxu0 0.0
    %191 = vmatpush2.msra.mxu0 0.0
    %192 = vmatprep.subr.mxu0 0.0
    %193 = vmatpush2.msra.mxu0 0.0
    %194 = vmatprep.subr.mxu0 0.0
    %195 = vmatpush2.msra.mxu0 0.0
    %196 = vmatprep.subr.mxu0 0.0
    %197 = vmatpush2.msra.mxu0 0.0
    %198 = vmatprep.subr.mxu0 0.0
    %199 = vmatpush2.msra.mxu0 0.0
    %200 = vmatprep.subr.mxu0 0.0
    %201 = vmatpush2.msra.mxu0 0.0
    %202 = vmatprep.subr.mxu0 0.0
    %203 = vmatpush2.msra.mxu0 0.0
    %204 = vmatprep.subr.mxu0 0.0
    %205 = vmatpush2.msra.mxu0 0.0
    %206 = vmatprep.subr.mxu0 0.0
    %207 = vmatpush2.msra.mxu0 0.0
    %208 = vmatprep.mubr.f32.mxu0 0.0
    %209 = vmatmul.mubr.f32.gmra.mxu0 %v78
    %v210 = vpop.f32.mrf.mxu0
    %v211 = vadd.f32 0.0, %v210
    %v212 = vpop.f32.mrf.mxu0
    %v213 = vadd.f32 0.0, %v212
    %214 = vmatprep.mubr.f32.mxu0 0.0
    %215 = vmatmul.mubr.f32.gmra.mxu0 %v79
    %v216 = vpop.f32.mrf.mxu0
    %v217 = vadd.f32 0.0, %v216
    %v218 = vpop.f32.mrf.mxu0
    %v219 = vadd.f32 0.0, %v218
    %220 = vdwg.mxu0
    %221 = vmatprep.subr.mxu0 %v111
    %222 = vmatpush1.msra.mxu0 %v110
    %223 = vmatprep.subr.mxu0 %v109
    %224 = vmatpush1.msra.mxu0 %v108
    %225 = vmatprep.subr.mxu0 %v107
    %226 = vmatpush1.msra.mxu0 %v106
    %227 = vmatprep.subr.mxu0 %v105
    %228 = vmatpush1.msra.mxu0 %v104
    %229 = vmatprep.subr.mxu0 %v103
    %230 = vmatpush1.msra.mxu0 %v102
    %231 = vmatprep.subr.mxu0 %v101
    %232 = vmatpush1.msra.mxu0 %v100
    %233 = vmatprep.subr.mxu0 %v99
    %234 = vmatpush1.msra.mxu0 %v98
    %235 = vmatprep.subr.mxu0 %v97
    %236 = vmatpush1.msra.mxu0 %v96
    %237 = vmatprep.subr.mxu0 %v95
    %238 = vmatpush1.msra.mxu0 %v94
    %239 = vmatprep.subr.mxu0 %v93
    %240 = vmatpush1.msra.mxu0 %v92
    %241 = vmatprep.subr.mxu0 %v91
    %242 = vmatpush1.msra.mxu0 %v90
    %243 = vmatprep.subr.mxu0 %v89
    %244 = vmatpush1.msra.mxu0 %v88
    %245 = vmatprep.subr.mxu0 %v87
    %246 = vmatpush1.msra.mxu0 %v86
    %247 = vmatprep.subr.mxu0 %v85
    %248 = vmatpush1.msra.mxu0 %v84
    %249 = vmatprep.subr.mxu0 %v83
    %250 = vmatpush1.msra.mxu0 %v82
    %251 = vmatprep.subr.mxu0 %v81
    %252 = vmatpush1.msra.mxu0 %v80
    %253 = vmatprep.subr.mxu0 0.0
    %254 = vmatpush2.msra.mxu0 0.0
    %255 = vmatprep.subr.mxu0 0.0
    %256 = vmatpush2.msra.mxu0 0.0
    %257 = vmatprep.subr.mxu0 0.0
    %258 = vmatpush2.msra.mxu0 0.0
    %259 = vmatprep.subr.mxu0 0.0
    %260 = vmatpush2.msra.mxu0 0.0
    %261 = vmatprep.subr.mxu0 0.0
    %262 = vmatpush2.msra.mxu0 0.0
    %263 = vmatprep.subr.mxu0 0.0
    %264 = vmatpush2.msra.mxu0 0.0
    %265 = vmatprep.subr.mxu0 0.0
    %266 = vmatpush2.msra.mxu0 0.0
    %267 = vmatprep.subr.mxu0 0.0
    %268 = vmatpush2.msra.mxu0 0.0
    %269 = vmatprep.subr.mxu0 0.0
    %270 = vmatpush2.msra.mxu0 0.0
    %271 = vmatprep.subr.mxu0 0.0
    %272 = vmatpush2.msra.mxu0 0.0
    %273 = vmatprep.subr.mxu0 0.0
    %274 = vmatpush2.msra.mxu0 0.0
    %275 = vmatprep.subr.mxu0 0.0
    %276 = vmatpush2.msra.mxu0 0.0
    %277 = vmatprep.subr.mxu0 0.0
    %278 = vmatpush2.msra.mxu0 0.0
    %279 = vmatprep.subr.mxu0 0.0
    %280 = vmatpush2.msra.mxu0 0.0
    %281 = vmatprep.subr.mxu0 0.0
    %282 = vmatpush2.msra.mxu0 0.0
    %283 = vmatprep.subr.mxu0 0.0
    %284 = vmatpush2.msra.mxu0 0.0
    %285 = vmatprep.mubr.f32.mxu0 0.0
    %286 = vmatmul.mubr.f32.gmra.mxu0 %v76
    %v287 = vpop.f32.mrf.mxu0
    %v288 = vadd.f32 %v211, %v287
    %v289 = vpop.f32.mrf.mxu0
    %v290 = vadd.f32 %v213, %v289
    %291 = vmatprep.mubr.f32.mxu0 0.0
    %292 = vmatmul.mubr.f32.gmra.mxu0 %v77
    %v293 = vpop.f32.mrf.mxu0
    %v294 = vadd.f32 %v217, %v293
    %v295 = vpop.f32.mrf.mxu0
    %v296 = vadd.f32 %v219, %v295
    %297 = vdwg.mxu0
    %v298 = vmul.f32 %v288, 0.2
    %v299 = vmul.f32 %v290, 0.2
    %v300 = vmul.f32 %v294, 0.2
    %v301 = vmul.f32 %v296, 0.2
    %v302 = vmax.f32 %v288, %v298
    %v303 = vmax.f32 %v290, %v299
    %v304 = vmax.f32 %v294, %v300
    %v305 = vmax.f32 %v296, %v301
    %v306 = vadd.f32 %v302, 1.0
    %v307 = vadd.f32 %v304, 1.0
    %v308 = vld [vmem:[%s4] sm:$0x1]
    %v310 = vlaneseq
    %v311 = vshrl.u32 %v310, 7
    %v312 = vsub.s32 0, %v311
    %v313 = vrot.slane %v308, %v312
    %v315 = vmul.f32 %v306, %v313
    %v316 = vmul.f32 %v307, %v313
    %v317 = vadd.f32 %v315, %v303
    %v318 = vadd.f32 %v316, %v305
    %v319 = vadd.f32 %v76, %v317
    %v320 = vadd.f32 %v77, %v318
    %v321 = vsub.f32 %v319, %v78
    %v322 = vsub.f32 %v320, %v79
    %323 = vst [vmem:[#allocation10] sm:$0xff] %v321
    %324 = vst [vmem:[#allocation10 + $0x8] sm:$0xff] %v322
    // Predicated region
    $region38: #{tpu_custom_call.1} parent=1 // pred_check
      _
    $region39: #{tpu_custom_call.1} parent=1 // pred_check_branch
      %326 = sbr.rel (0) target = $region41
    $region40: #{tpu_custom_call.1} parent=1 // pred_region
      %s328 = ssub.s32 256, 256
      %329 = vsyncadd [#allocation4], %s328
      %s330 = sshll.u32 [#allocation10], 4
      %s331 = int_to_ptr.vmem [resolvable:$true] %s330
      %336 = dma.vmem_to_hbm [thread:$0]  %s331, 256, %s5, [#allocation4], 128, 128, 8
    $region41: #{tpu_custom_call.1} parent=1 // pred_fallthru
      _
    // Predicated region
    $region42: #{tpu_custom_call.1} parent=1 // pred_check
      _
    $region43: #{tpu_custom_call.1} parent=1 // pred_check_branch
      %338 = sbr.rel (0) target = $region45
    $region44: #{tpu_custom_call.1} parent=1 // pred_region
      %339 = dma.done [#allocation4], 256
    $region45: #{tpu_custom_call.1} parent=1 // pred_fallthru
      _
    %340 = vsyncpa [#allocation3], 1
    %341 = vsyncpa [#allocation6], 1
    %342 = vsyncpa [#allocation9], 1
    %343 = vsyncpa [#allocation4], 1

</llo_original>
